<compile_context>
chip_gen: v7x
topology: tpu7x:2x2x1
jax: 0.10.0
libtpu: 0.0.40
codegen_flags: <defaults>
</compile_context>

<pallas_src>
import math

import numpy as np
import jax
import jax.numpy as jnp
from jax.experimental import pallas as pl
from jax.experimental.pallas import tpu as pltpu


# Per-tile byte cap: with double buffering (2 input + 2 output buffers live)
# total VMEM use stays <= 8 MiB, under every generation's scoped default
# (v5e 16 MiB, v6e 32 MiB, v7x 32 MiB-of-64 MiB).
_MAX_TILE_BYTES = 2 * 1024 * 1024
_LANE_CANDIDATES = (2048, 1024, 512, 256, 128)


def _copy_kernel(x_ref, o_ref):
    # TODO(synk): NetworkModule.forward is abstract (`pass`); identity on
    # `states` is the only well-defined computation to implement.
    o_ref[...] = x_ref[...]


def _pick_2d_layout(n_elements, itemsize):
    """Pick a lane-dense (rows, lane) view and a row-block size, or None."""
    for lane in _LANE_CANDIDATES:
        if n_elements % lane == 0:
            rows = n_elements // lane
            max_rows = max(1, _MAX_TILE_BYTES // (lane * itemsize))
            if rows <= max_rows:
                block_rows = rows  # block == full dim -> no (8,128) issue
            else:
                block_rows = max(8, min(512, (max_rows // 8) * 8))
            return rows, lane, block_rows
    return None


def _identity_copy(x):
    """Materialized identity copy of `x` via a tiled, pipelined Pallas kernel."""
    n = int(math.prod(x.shape)) if x.ndim else 1
    itemsize = jnp.dtype(x.dtype).itemsize
    bytes_accessed = 2 * n * itemsize
    layout = _pick_2d_layout(n, itemsize)

    if layout is None:
        # Fallback: element count not a multiple of 128 lanes. Single
        # whole-array block (block dims == array dims, so the (8,128)
        # constraint does not apply).
        return pl.pallas_call(
            _copy_kernel,
            out_shape=jax.ShapeDtypeStruct(x.shape, x.dtype),
            grid_spec=pl.GridSpec(
                grid=(1,),
                in_specs=[pl.BlockSpec(x.shape, lambda i: (0,) * x.ndim)],
                out_specs=pl.BlockSpec(x.shape, lambda i: (0,) * x.ndim),
            ),
            compiler_params=pltpu.CompilerParams(
                dimension_semantics=("arbitrary",),
            ),
            cost_estimate=pl.CostEstimate(
                flops=0, transcendentals=0, bytes_accessed=bytes_accessed),
            input_output_aliases={0: 0},
        )(x)

    rows, lane, block_rows = layout
    x2d = x.reshape(rows, lane)          # free layout plumbing in the wrapper
    num_blocks = pl.cdiv(rows, block_rows)

    out2d = pl.pallas_call(
        _copy_kernel,
        out_shape=jax.ShapeDtypeStruct((rows, lane), x.dtype),
        grid_spec=pl.GridSpec(
            grid=(num_blocks,),
            in_specs=[pl.BlockSpec((block_rows, lane), lambda i: (i, 0))],
            out_specs=pl.BlockSpec((block_rows, lane), lambda i: (i, 0)),
        ),
        compiler_params=pltpu.CompilerParams(
            # "parallel": lets v7x shard the row-block grid over its 2 TCs;
            # near-neutral (but harmless) on single-TC v5e/v6e.
            dimension_semantics=("parallel",),
            vmem_limit_bytes=32 * 1024 * 1024,
        ),
        cost_estimate=pl.CostEstimate(
            flops=0, transcendentals=0, bytes_accessed=bytes_accessed),
        # Alias input 0 -> output 0: identity copy can reuse the same HBM
        # buffer when the operand is donatable (no extra allocation).
        input_output_aliases={0: 0},
    )(x2d)
    return out2d.reshape(x.shape)


@jax.jit
def network_module_forward(states: jax.Array) -> jax.Array:
    """Pallas equivalent of NetworkModule.forward: identity on `states`.

    (If a distinct output buffer is not required, the zero-cost alternative is
    simply `return states` — no kernel, no HBM traffic.)
    """
    return _identity_copy(states)


class NetworkModulePallas:
    """Mirror of the PyTorch NetworkModule API (abstract network base class)."""

    def __init__(self, input_shape):
        self.input_shape = input_shape

    def forward(self, states):
        return network_module_forward(states)

    def output_shape(self):
        # Identity pass-through: output shape equals input shape.
        return self.input_shape


if __name__ == "__main__":
    key = jax.random.PRNGKey(0)
    # Small NCHW states tensor consistent with an image-like input.
    input_shape = (2, 4, 16, 16)  # (batch, channels, height, width)
    states = jax.random.normal(key, input_shape, dtype=jnp.float32)

    # Snapshot expected values on host before running (the kernel may alias
    # buffers via input_output_aliases; XLA preserves live inputs, but compare
    # against a host copy to be safe).
    expected = np.asarray(states)

    net = NetworkModulePallas(input_shape)
    out = jax.block_until_ready(net.forward(states))

    # Sanity check: identity semantics, shape/dtype preserved.
    assert out.shape == states.shape
    assert out.dtype == states.dtype
    assert np.array_equal(np.asarray(out), expected)

    print("KERNEL_OK")
</pallas_src>

<mosaic_0001>
module attributes {stable_mosaic.version = 11 : i64} {
  func.func @_copy_kernel(%arg0: i32, %arg1: memref<1x2048xf32, #tpu.memory_space<vmem>>, %arg2: memref<1x2048xf32, #tpu.memory_space<vmem>>) attributes {dimension_semantics = [#tpu.dimension_semantics<parallel>], iteration_bounds = array<i64: 1>, scalar_prefetch = 0 : i64, scratch_operands = 0 : i64, tpu.core_type = #tpu.core_type<tc>, window_params = [{transform_indices = @transform_0, window_bounds = array<i64: 1, 2048>}, {transform_indices = @transform_1, window_bounds = array<i64: 1, 2048>}]} {
    %c0 = arith.constant 0 : index
    %c0_0 = arith.constant 0 : index
    %0 = vector.load %arg1[%c0, %c0_0] : memref<1x2048xf32, #tpu.memory_space<vmem>>, vector<1x2048xf32>
    %c0_1 = arith.constant 0 : index
    %c0_2 = arith.constant 0 : index
    %1 = vector.load %arg2[%c0_1, %c0_2] : memref<1x2048xf32, #tpu.memory_space<vmem>>, vector<1x2048xf32>
    tpu.vector_store %arg2[%c0_1, %c0_2], %0 {strides = array<i32>} : memref<1x2048xf32, #tpu.memory_space<vmem>>, vector<1x2048xf32>,
    return
  }
  func.func @transform_0(%arg0: i32) -> (i32, i32) {
    %c0_i32 = arith.constant 0 : i32
    %c0_i32_0 = arith.constant 0 : i32
    return %arg0, %c0_i32 : i32, i32
  }
  func.func @transform_1(%arg0: i32) -> (i32, i32) {
    %c0_i32 = arith.constant 0 : i32
    %c0_i32_0 = arith.constant 0 : i32
    return %arg0, %c0_i32 : i32, i32
  }
}

</mosaic_0001>

<llo_original>
// kernel: network_module_forward.1
$region0: #{network_module_forward.1}
  #allocation0 [shape = 'u32[]', space=smem, size = 0x4, offset = 0x4, fixed_abs, tag = 'smem constant byte address 0x4 - core index']
  #allocation1 [shape = 'u32[144,128]{1,0:T(1,128)}', space=vmem, size = 0x12000, scoped, tag = 'internal scratch']
  %s0 = inlined_call_operand.vmem [shape: f32[1,2048], index: 0, kind: input, shape index: {}, may-alias: {0,1}]
  %s1 = inlined_call_operand.vmem [shape: f32[1,2048], index: 1, kind: output, shape index: {}, may-alias: {0,1}]
  %s2 = sld [smem:[#allocation0]]
  $region14: #{network_module_forward.1} parent=0
    _
  %s4 = ssub.s32 1, %s2
  %s5 = scalar_select 0, %s4, %s2
  // Predicated region
  $region2: #{network_module_forward.1} parent=0 // pred_check
    _
  $region3: #{network_module_forward.1} parent=0 // pred_check_branch
    %7 = sbr.rel (0) target = $region5
  $region4: #{network_module_forward.1} parent=0 // pred_region
    _
  $region5: #{network_module_forward.1} parent=0 // pred_fallthru
    _
  %v8 = vld [vmem:[%s0] sm:$0xff]
  %v9 = vld [vmem:[%s0 + $0x8] sm:$0xff]
  %10 = vst [vmem:[%s1] sm:$0xff] %v8
  %11 = vst [vmem:[%s1 + $0x8] sm:$0xff] %v9
  // Predicated region
  $region6: #{network_module_forward.1} parent=0 // pred_check
    _
  $region7: #{network_module_forward.1} parent=0 // pred_check_branch
    %13 = sbr.rel (0) target = $region9
  $region8: #{network_module_forward.1} parent=0 // pred_region
    _
  $region9: #{network_module_forward.1} parent=0 // pred_fallthru
    _
  // Predicated region
  $region10: #{network_module_forward.1} parent=0 // pred_check
    _
  $region11: #{network_module_forward.1} parent=0 // pred_check_branch
    %15 = sbr.rel (0) target = $region13
  $region12: #{network_module_forward.1} parent=0 // pred_region
    _
  $region13: #{network_module_forward.1} parent=0 // pred_fallthru
    _

</llo_original>
